<compile_context>
chip_gen: v5e
topology: v5e:2x2
jax: 0.10.0
libtpu: 0.0.40
codegen_flags: <defaults>
</compile_context>

<pallas_src>
import jax
import jax.numpy as jnp
from jax.experimental import pallas as pl
from jax.experimental.pallas import tpu as pltpu

_LANE = 128      # vreg lane width (last dim)
_SUBLANE = 8     # vreg sublane width (second-to-last dim)


def _round_up(n: int, m: int) -> int:
    return ((n + m - 1) // m) * m


def _mlp_kernel(x_ref, w1_ref, b1_ref, w2_ref, b2_ref, out_ref):
    # fc1: (TB, Dp) @ (Dp, Hp) + (1, Hp)   -- MXU, f32 accumulate
    h = jnp.dot(x_ref[...], w1_ref[...], preferred_element_type=jnp.float32)
    # bias + ReLU on the VPU (kept in f32; v5e has no bf16 VPU path)
    h = jnp.maximum(h + b1_ref[...], 0.0)
    # fc2: (TB, Hp) @ (Hp, Cp) + (1, Cp)
    y = jnp.dot(h, w2_ref[...], preferred_element_type=jnp.float32)
    out_ref[...] = (y + b2_ref[...]).astype(out_ref.dtype)


def mlp_forward(x, w1, b1, w2, b2, *, block_b: int = 128):
    """x: (B, D); w1: (D, H); b1: (H,); w2: (H, C); b2: (C,).

    Weights are stored as (in_features, out_features) (transposed vs. PyTorch).
    Feature dims are zero-padded to lane width (128) and the batch is padded to a
    multiple of the batch tile so every block is (8,128)-aligned and lane-dense.
    Zero padding is exact: padded input columns hit zero weight rows, padded
    hidden units get zero weight/bias (relu(0)=0), padded output columns are
    sliced off before returning.
    """
    B, D = x.shape
    H = w1.shape[1]
    C = w2.shape[1]

    Dp = _round_up(D, _LANE)
    Hp = _round_up(H, _LANE)
    Cp = _round_up(C, _LANE)
    tb = min(block_b, _round_up(B, _SUBLANE))   # batch tile (>= 8, <= block_b)
    Bp = _round_up(B, tb)

    dt = x.dtype
    x_p = jnp.zeros((Bp, Dp), dt).at[:B, :D].set(x)
    w1_p = jnp.zeros((Dp, Hp), w1.dtype).at[:D, :H].set(w1)
    b1_p = jnp.zeros((1, Hp), b1.dtype).at[0, :H].set(b1)
    w2_p = jnp.zeros((Hp, Cp), w2.dtype).at[:H, :C].set(w2)
    b2_p = jnp.zeros((1, Cp), b2.dtype).at[0, :C].set(b2)

    grid = (Bp // tb,)

    out_p = pl.pallas_call(
        _mlp_kernel,
        out_shape=jax.ShapeDtypeStruct((Bp, Cp), dt),
        grid_spec=pl.GridSpec(
            grid=grid,
            in_specs=[
                # batch tile marches over the grid
                pl.BlockSpec((tb, Dp), lambda i: (i, 0)),
                # weights & biases: same block index every step -> stay resident
                pl.BlockSpec((Dp, Hp), lambda i: (0, 0)),
                pl.BlockSpec((1, Hp), lambda i: (0, 0)),
                pl.BlockSpec((Hp, Cp), lambda i: (0, 0)),
                pl.BlockSpec((1, Cp), lambda i: (0, 0)),
            ],
            out_specs=pl.BlockSpec((tb, Cp), lambda i: (i, 0)),
        ),
        compiler_params=pltpu.CompilerParams(
            # independent batch tiles -> shard across TensorCores (v7x: 2 TCs)
            dimension_semantics=("parallel",)),
    )(x_p, w1_p, b1_p, w2_p, b2_p)

    return out_p[:B, :C]


def _reference(x, w1, b1, w2, b2):
    h = jnp.maximum(x @ w1 + b1, 0.0)
    return h @ w2 + b2


if __name__ == "__main__":
    # Module shapes: input_size=32, hidden=100, num_classes=10.
    # Batch chosen >= 128 so the MXU sees full-row tiles and the grid has >1
    # parallel block (256 / 128 = 2 tiles).
    B, D, H, C = 256, 32, 100, 10

    key = jax.random.PRNGKey(0)
    kx, kw1, kb1, kw2, kb2 = jax.random.split(key, 5)

    x = jax.random.normal(kx, (B, D), dtype=jnp.float32)
    # Deterministic "PyTorch-like" init (uniform in +-1/sqrt(fan_in)), stored as (in, out).
    w1 = jax.random.uniform(kw1, (D, H), dtype=jnp.float32,
                            minval=-1.0 / jnp.sqrt(D), maxval=1.0 / jnp.sqrt(D))
    b1 = jax.random.uniform(kb1, (H,), dtype=jnp.float32,
                            minval=-1.0 / jnp.sqrt(D), maxval=1.0 / jnp.sqrt(D))
    w2 = jax.random.uniform(kw2, (H, C), dtype=jnp.float32,
                            minval=-1.0 / jnp.sqrt(H), maxval=1.0 / jnp.sqrt(H))
    b2 = jax.random.uniform(kb2, (C,), dtype=jnp.float32,
                            minval=-1.0 / jnp.sqrt(H), maxval=1.0 / jnp.sqrt(H))

    fwd = jax.jit(mlp_forward)
    out = jax.block_until_ready(fwd(x, w1, b1, w2, b2))

    ref = _reference(x, w1, b1, w2, b2)
    assert out.shape == (B, C)
    assert jnp.allclose(out, ref, atol=1e-4, rtol=1e-4), "mismatch vs reference"

    print("KERNEL_OK")
</pallas_src>

<mosaic_0001>
module attributes {stable_mosaic.version = 11 : i64} {
  func.func @_mlp_kernel(%arg0: i32, %arg1: memref<128x128xf32, #tpu.memory_space<vmem>>, %arg2: memref<128x128xf32, #tpu.memory_space<vmem>>, %arg3: memref<1x128xf32, #tpu.memory_space<vmem>>, %arg4: memref<128x128xf32, #tpu.memory_space<vmem>>, %arg5: memref<1x128xf32, #tpu.memory_space<vmem>>, %arg6: memref<128x128xf32, #tpu.memory_space<vmem>>) attributes {dimension_semantics = [#tpu.dimension_semantics<parallel>], iteration_bounds = array<i64: 2>, scalar_prefetch = 0 : i64, scratch_operands = 0 : i64, tpu.core_type = #tpu.core_type<tc>, window_params = [{transform_indices = @transform_0, window_bounds = array<i64: 128, 128>}, {pipeline_mode = #tpu.pipeline_mode<synchronous>, transform_indices = @transform_1, window_bounds = array<i64: 128, 128>}, {pipeline_mode = #tpu.pipeline_mode<synchronous>, transform_indices = @transform_2, window_bounds = array<i64: 1, 128>}, {pipeline_mode = #tpu.pipeline_mode<synchronous>, transform_indices = @transform_3, window_bounds = array<i64: 128, 128>}, {pipeline_mode = #tpu.pipeline_mode<synchronous>, transform_indices = @transform_4, window_bounds = array<i64: 1, 128>}, {transform_indices = @transform_5, window_bounds = array<i64: 128, 128>}]} {
    %c0 = arith.constant 0 : index
    %c0_0 = arith.constant 0 : index
    %0 = vector.load %arg1[%c0, %c0_0] : memref<128x128xf32, #tpu.memory_space<vmem>>, vector<128x128xf32>
    %c0_1 = arith.constant 0 : index
    %c0_2 = arith.constant 0 : index
    %1 = vector.load %arg2[%c0_1, %c0_2] : memref<128x128xf32, #tpu.memory_space<vmem>>, vector<128x128xf32>
    %cst = arith.constant dense<0.000000e+00> : vector<128x128xf32>
    %2 = tpu.matmul %0, %1, %cst {dimension_numbers = #tpu.dot_dimension_numbers<[1], [0], [0], [1], [0, 0, 1, 1], [], []>} : vector<128x128xf32>, vector<128x128xf32>, vector<128x128xf32> -> vector<128x128xf32>
    %c0_3 = arith.constant 0 : index
    %c0_4 = arith.constant 0 : index
    %3 = vector.load %arg3[%c0_3, %c0_4] : memref<1x128xf32, #tpu.memory_space<vmem>>, vector<1x128xf32>
    %4 = vector.broadcast %3 : vector<1x128xf32> to vector<128x128xf32>
    %5 = arith.addf %2, %4 : vector<128x128xf32>
    %cst_5 = arith.constant 0.000000e+00 : f32
    %6 = vector.broadcast %cst_5 : f32 to vector<128x128xf32>
    %7 = arith.maximumf %5, %6 : vector<128x128xf32>
    %c0_6 = arith.constant 0 : index
    %c0_7 = arith.constant 0 : index
    %8 = vector.load %arg4[%c0_6, %c0_7] : memref<128x128xf32, #tpu.memory_space<vmem>>, vector<128x128xf32>
    %cst_8 = arith.constant dense<0.000000e+00> : vector<128x128xf32>
    %9 = tpu.matmul %7, %8, %cst_8 {dimension_numbers = #tpu.dot_dimension_numbers<[1], [0], [0], [1], [0, 0, 1, 1], [], []>} : vector<128x128xf32>, vector<128x128xf32>, vector<128x128xf32> -> vector<128x128xf32>
    %c0_9 = arith.constant 0 : index
    %c0_10 = arith.constant 0 : index
    %10 = vector.load %arg5[%c0_9, %c0_10] : memref<1x128xf32, #tpu.memory_space<vmem>>, vector<1x128xf32>
    %11 = vector.broadcast %10 : vector<1x128xf32> to vector<128x128xf32>
    %12 = arith.addf %9, %11 : vector<128x128xf32>
    %c0_11 = arith.constant 0 : index
    %c0_12 = arith.constant 0 : index
    %13 = vector.load %arg6[%c0_11, %c0_12] : memref<128x128xf32, #tpu.memory_space<vmem>>, vector<128x128xf32>
    tpu.vector_store %arg6[%c0_11, %c0_12], %12 {strides = array<i32>} : memref<128x128xf32, #tpu.memory_space<vmem>>, vector<128x128xf32>,
    return
  }
  func.func @transform_0(%arg0: i32) -> (i32, i32) {
    %c0_i32 = arith.constant 0 : i32
    %c0_i32_0 = arith.constant 0 : i32
    return %arg0, %c0_i32 : i32, i32
  }
  func.func @transform_1(%arg0: i32) -> (i32, i32) {
    %c0_i32 = arith.constant 0 : i32
    %c0_i32_0 = arith.constant 0 : i32
    %c0_i32_1 = arith.constant 0 : i32
    return %c0_i32, %c0_i32_0 : i32, i32
  }
  func.func @transform_2(%arg0: i32) -> (i32, i32) {
    %c0_i32 = arith.constant 0 : i32
    %c0_i32_0 = arith.constant 0 : i32
    %c0_i32_1 = arith.constant 0 : i32
    return %c0_i32, %c0_i32_0 : i32, i32
  }
  func.func @transform_3(%arg0: i32) -> (i32, i32) {
    %c0_i32 = arith.constant 0 : i32
    %c0_i32_0 = arith.constant 0 : i32
    %c0_i32_1 = arith.constant 0 : i32
    return %c0_i32, %c0_i32_0 : i32, i32
  }
  func.func @transform_4(%arg0: i32) -> (i32, i32) {
    %c0_i32 = arith.constant 0 : i32
    %c0_i32_0 = arith.constant 0 : i32
    %c0_i32_1 = arith.constant 0 : i32
    return %c0_i32, %c0_i32_0 : i32, i32
  }
  func.func @transform_5(%arg0: i32) -> (i32, i32) {
    %c0_i32 = arith.constant 0 : i32
    %c0_i32_0 = arith.constant 0 : i32
    return %arg0, %c0_i32 : i32, i32
  }
}

</mosaic_0001>

<llo_original>
// kernel: mlp_forward.1
$region0: #{mlp_forward.1}
  #allocation0 [shape = 'u32[]', space=smem, size = 0x4, offset = 0x4, fixed_abs, tag = 'smem constant byte address 0x4 - core index']
  #allocation1 [shape = 'u32[72,128]{1,0:T(1,128)}', space=vmem, size = 0x9000, scoped, tag = 'internal scratch']
  %s0 = inlined_call_operand.vmem [shape: f32[256,128], index: 0, kind: input, shape index: {}]
  %s1 = inlined_call_operand.vmem [shape: f32[128,128], index: 1, kind: input, shape index: {}]
  %s2 = inlined_call_operand.vmem [shape: f32[1,128], index: 2, kind: input, shape index: {}]
  %s3 = inlined_call_operand.vmem [shape: f32[128,128], index: 3, kind: input, shape index: {}]
  %s4 = inlined_call_operand.vmem [shape: f32[1,128], index: 4, kind: input, shape index: {}]
  %s5 = inlined_call_operand.vmem [shape: f32[256,128], index: 5, kind: output, shape index: {}]
  %s6 = sld [smem:[#allocation0]]
  $region53: #{mlp_forward.1} parent=0
    _
  %s8 = ssub.s32 1, %s6
  %s9 = scalar_select 0, %s8, %s6
  loop: start=0, step=1, limit=4
  $region2: #{mlp_forward.1} parent=0 // loop_pre_header
    _
  $region3: #{mlp_forward.1} parent=0 // loop_header
    %s11 = sphi 0, %s15
    %p12 = scmp.ge.s32.totalorder %s11, 4
    %s21 = sphi 0, %s23
    %s24 = sphi 0, %s21
    %s25 = sphi 0, %s24
    %s41 = sphi 0, %s25
    %s45 = sphi 0, %s45
    %s47 = sphi 0, %s45
    %s48 = sphi 0, %s47
    %s62 = sphi 0, %s48
    %s66 = sphi 0, %s66
    %s68 = sphi 0, %s66
    %s69 = sphi 0, %s68
    %s83 = sphi 0, %s69
    %s87 = sphi 0, %s87
    %s89 = sphi 0, %s87
    %s90 = sphi 0, %s89
    %s104 = sphi 0, %s90
    %s108 = sphi 0, %s108
    %s110 = sphi 0, %s108
    %s111 = sphi 0, %s110
    %s125 = sphi 0, %s111
    %s131 = sphi 0, %s133
    %s134 = sphi 0, %s131
    %s135 = sphi 0, %s134
    %s151 = sphi 0, %s135
  $region4: #{mlp_forward.1} parent=0 // loop_header_branch
    %14 = sbr.rel (%p12) target = $region8
  $region5: #{mlp_forward.1} parent=0 // loop_body
    %s16 = ssub.s32 %s11, 1
    %s17 = ssub.s32 %s11, 2
    %s18 = sadd.s32 %s11, 1
    %s19 = ssub.s32 %s11, %s18
    %p20 = scmp.eq.s32.totalorder %s19, 0
    %s22 = sadd.s32 %s21, 1
    %s23 = scalar_select %p20, %s21, %s22
    %p26 = pneg %p20
    %p27 = scmp.eq.s32.totalorder %s11, 1
    %p28 = por %p26, %p27
    %p29 = scmp.ne.s32.totalorder %s21, %s24
    %p30 = scmp.eq.s32.totalorder %s11, 0
    %p31 = por %p29, %p30
    %p32 = scmp.ne.s32.totalorder %s21, %s24
    %p33 = scmp.eq.s32.totalorder %s16, 1
    %p34 = por %p32, %p33
    %p35 = scmp.ne.s32.totalorder %s24, %s25
    %p36 = scmp.eq.s32.totalorder %s16, 0
    %p37 = por %p35, %p36
    %p38 = scmp.ne.s32.totalorder %s24, %s25
    %p39 = scmp.eq.s32.totalorder %s17, 1
    %p40 = por %p38, %p39
    %p42 = scmp.ne.s32.totalorder %s25, %s41
    %p43 = scmp.eq.s32.totalorder %s17, 0
    %p44 = por %p42, %p43
    %s46 = sadd.s32 %s45, 1
    %p49 = scmp.eq.s32.totalorder %s11, 1
    %p50 = scmp.ne.s32.totalorder %s45, %s47
    %p51 = scmp.eq.s32.totalorder %s11, 0
    %p52 = por %p50, %p51
    %p53 = scmp.ne.s32.totalorder %s45, %s47
    %p54 = scmp.eq.s32.totalorder %s16, 1
    %p55 = por %p53, %p54
    %p56 = scmp.ne.s32.totalorder %s47, %s48
    %p57 = scmp.eq.s32.totalorder %s16, 0
    %p58 = por %p56, %p57
    %p59 = scmp.ne.s32.totalorder %s47, %s48
    %p60 = scmp.eq.s32.totalorder %s17, 1
    %p61 = por %p59, %p60
    %p63 = scmp.ne.s32.totalorder %s48, %s62
    %p64 = scmp.eq.s32.totalorder %s17, 0
    %p65 = por %p63, %p64
    %s67 = sadd.s32 %s66, 1
    %p70 = scmp.eq.s32.totalorder %s11, 1
    %p71 = scmp.ne.s32.totalorder %s66, %s68
    %p72 = scmp.eq.s32.totalorder %s11, 0
    %p73 = por %p71, %p72
    %p74 = scmp.ne.s32.totalorder %s66, %s68
    %p75 = scmp.eq.s32.totalorder %s16, 1
    %p76 = por %p74, %p75
    %p77 = scmp.ne.s32.totalorder %s68, %s69
    %p78 = scmp.eq.s32.totalorder %s16, 0
    %p79 = por %p77, %p78
    %p80 = scmp.ne.s32.totalorder %s68, %s69
    %p81 = scmp.eq.s32.totalorder %s17, 1
    %p82 = por %p80, %p81
    %p84 = scmp.ne.s32.totalorder %s69, %s83
    %p85 = scmp.eq.s32.totalorder %s17, 0
    %p86 = por %p84, %p85
    %s88 = sadd.s32 %s87, 1
    %p91 = scmp.eq.s32.totalorder %s11, 1
    %p92 = scmp.ne.s32.totalorder %s87, %s89
    %p93 = scmp.eq.s32.totalorder %s11, 0
    %p94 = por %p92, %p93
    %p95 = scmp.ne.s32.totalorder %s87, %s89
    %p96 = scmp.eq.s32.totalorder %s16, 1
    %p97 = por %p95, %p96
    %p98 = scmp.ne.s32.totalorder %s89, %s90
    %p99 = scmp.eq.s32.totalorder %s16, 0
    %p100 = por %p98, %p99
    %p101 = scmp.ne.s32.totalorder %s89, %s90
    %p102 = scmp.eq.s32.totalorder %s17, 1
    %p103 = por %p101, %p102
    %p105 = scmp.ne.s32.totalorder %s90, %s104
    %p106 = scmp.eq.s32.totalorder %s17, 0
    %p107 = por %p105, %p106
    %s109 = sadd.s32 %s108, 1
    %p112 = scmp.eq.s32.totalorder %s11, 1
    %p113 = scmp.ne.s32.totalorder %s108, %s110
    %p114 = scmp.eq.s32.totalorder %s11, 0
    %p115 = por %p113, %p114
    %p116 = scmp.ne.s32.totalorder %s108, %s110
    %p117 = scmp.eq.s32.totalorder %s16, 1
    %p118 = por %p116, %p117
    %p119 = scmp.ne.s32.totalorder %s110, %s111
    %p120 = scmp.eq.s32.totalorder %s16, 0
    %p121 = por %p119, %p120
    %p122 = scmp.ne.s32.totalorder %s110, %s111
    %p123 = scmp.eq.s32.totalorder %s17, 1
    %p124 = por %p122, %p123
    %p126 = scmp.ne.s32.totalorder %s111, %s125
    %p127 = scmp.eq.s32.totalorder %s17, 0
    %p128 = por %p126, %p127
    %s129 = ssub.s32 %s11, %s18
    %p130 = scmp.eq.s32.totalorder %s129, 0
    %s132 = sadd.s32 %s131, 1
    %s133 = scalar_select %p130, %s131, %s132
    %p136 = pneg %p130
    %p137 = scmp.eq.s32.totalorder %s11, 1
    %p138 = por %p136, %p137
    %p139 = scmp.ne.s32.totalorder %s131, %s134
    %p140 = scmp.eq.s32.totalorder %s11, 0
    %p141 = por %p139, %p140
    %p142 = scmp.ne.s32.totalorder %s131, %s134
    %p143 = scmp.eq.s32.totalorder %s16, 1
    %p144 = por %p142, %p143
    %p145 = scmp.ne.s32.totalorder %s134, %s135
    %p146 = scmp.eq.s32.totalorder %s16, 0
    %p147 = por %p145, %p146
    %p148 = scmp.ne.s32.totalorder %s134, %s135
    %p149 = scmp.eq.s32.totalorder %s17, 1
    %p150 = por %p148, %p149
    %p152 = scmp.ne.s32.totalorder %s135, %s151
    %p153 = scmp.eq.s32.totalorder %s17, 0
    %p154 = por %p152, %p153
    %p155 = scmp.le.s32.totalorder 1, %s11
    %p156 = scmp.lt.s32.totalorder %s11, 3
    %p157 = pnand %p155, %p156
    %p158 = pneg %p157
    // Predicated region
    $region9: #{mlp_forward.1} parent=5 // pred_check
      _
    $region10: #{mlp_forward.1} parent=5 // pred_check_branch
      %160 = sbr.rel (%p157) target = $region12
    $region11: #{mlp_forward.1} parent=5 // pred_region
      %s161 = ssub.s32 %s11, 1
      // Predicated region
      $region13: #{mlp_forward.1} parent=11 // pred_check
        %p162 = pneg %p58
      $region14: #{mlp_forward.1} parent=11 // pred_check_branch
        %164 = sbr.rel (%p162) target = $region16
      $region15: #{mlp_forward.1} parent=11 // pred_region
        _
      $region16: #{mlp_forward.1} parent=11 // pred_fallthru
        _
      // Predicated region
      $region17: #{mlp_forward.1} parent=11 // pred_check
        %p165 = pneg %p79
      $region18: #{mlp_forward.1} parent=11 // pred_check_branch
        %167 = sbr.rel (%p165) target = $region20
      $region19: #{mlp_forward.1} parent=11 // pred_region
        _
      $region20: #{mlp_forward.1} parent=11 // pred_fallthru
        _
      // Predicated region
      $region21: #{mlp_forward.1} parent=11 // pred_check
        %p168 = pneg %p100
      $region22: #{mlp_forward.1} parent=11 // pred_check_branch
        %170 = sbr.rel (%p168) target = $region24
      $region23: #{mlp_forward.1} parent=11 // pred_region
        _
      $region24: #{mlp_forward.1} parent=11 // pred_fallthru
        _
      // Predicated region
      $region25: #{mlp_forward.1} parent=11 // pred_check
        %p171 = pneg %p121
      $region26: #{mlp_forward.1} parent=11 // pred_check_branch
        %173 = sbr.rel (%p171) target = $region28
      $region27: #{mlp_forward.1} parent=11 // pred_region
        _
      $region28: #{mlp_forward.1} parent=11 // pred_fallthru
        _
    $region12: #{mlp_forward.1} parent=5 // pred_fallthru
      _
    %p174 = scmp.lt.s32.totalorder %s11, 2
    // Predicated region
    $region29: #{mlp_forward.1} parent=5 // pred_check
      %p175 = pneg %p174
    $region30: #{mlp_forward.1} parent=5 // pred_check_branch
      %177 = sbr.rel (%p175) target = $region32
    $region31: #{mlp_forward.1} parent=5 // pred_region
      // Predicated region
      $region33: #{mlp_forward.1} parent=31 // pred_check
        %p178 = pneg %p31
      $region34: #{mlp_forward.1} parent=31 // pred_check_branch
        %180 = sbr.rel (%p178) target = $region36
      $region35: #{mlp_forward.1} parent=31 // pred_region
        %s181 = smul.u32 16, %s11
        %p182 = scmp.lt.s32.totalorder %s181, 31
        %s183 = scalar_select %p182, %s181, 31
        %s184 = smul.addr %s183, 8
        %s185 = scalar_lea.vmem %s0, %s184
        %s186 = smul.u32 16, %s11
      $region36: #{mlp_forward.1} parent=31 // pred_fallthru
        _
    $region32: #{mlp_forward.1} parent=5 // pred_fallthru
      _
    %p187 = scmp.le.s32.totalorder 1, %s11
    %p188 = scmp.lt.s32.totalorder %s11, 3
    %p189 = pnand %p187, %p188
    %p190 = pneg %p189
    // Predicated region
    $region37: #{mlp_forward.1} parent=5 // pred_check
      _
    $region38: #{mlp_forward.1} parent=5 // pred_check_branch
      %192 = sbr.rel (%p189) target = $region40
    $region39: #{mlp_forward.1} parent=5 // pred_region
      %s193 = ssub.s32 %s11, 1
      %s194 = smul.u32 16, %s16
      %p195 = scmp.lt.s32.totalorder %s194, 31
      %s196 = scalar_select %p195, %s194, 31
      %s197 = smul.addr %s196, 8
      %s198 = scalar_lea.vmem %s0, %s197
      %p199 = pneg %p37
      %p200 = pneg %p34
      %p201 = pneg %p58
      %p202 = pneg %p55
      %p203 = pneg %p79
      %p204 = pneg %p76
      %p205 = pneg %p100
      %p206 = pneg %p97
      %p207 = pneg %p121
      %p208 = pneg %p118
      %p209 = pneg %p147
      %p210 = pneg %p144
      %s211 = smul.u32 16, %s16
      %p212 = scmp.lt.s32.totalorder %s211, 31
      %s213 = scalar_select %p212, %s211, 31
      %s214 = smul.addr %s213, 8
      %s215 = scalar_lea.vmem %s5, %s214
      %s216 = smul.u32 16, %s16
      %p217 = scmp.lt.s32.totalorder %s216, 31
      %s218 = scalar_select %p217, %s216, 31
      %s219 = smul.addr %s218, 8
      %s220 = scalar_lea.vmem %s0, %s219
      %s221 = smul.u32 16, %s16
      %s222 = smul.u32 16, %s16
      %p223 = scmp.lt.s32.totalorder %s222, 31
      %s224 = scalar_select %p223, %s222, 31
      %s225 = smul.addr %s224, 8
      %s226 = scalar_lea.vmem %s5, %s225
      %s227 = smul.u32 16, %s16
      %v228 = vld [vmem:[%s220] sm:$0xff]
      %v229 = vld [vmem:[%s220 + $0x8] sm:$0xff]
      %v230 = vld [vmem:[%s220 + $0x10] sm:$0xff]
      %v231 = vld [vmem:[%s220 + $0x18] sm:$0xff]
      %v232 = vld [vmem:[%s220 + $0x20] sm:$0xff]
      %v233 = vld [vmem:[%s220 + $0x28] sm:$0xff]
      %v234 = vld [vmem:[%s220 + $0x30] sm:$0xff]
      %v235 = vld [vmem:[%s220 + $0x38] sm:$0xff]
      %v236 = vld [vmem:[%s220 + $0x40] sm:$0xff]
      %v237 = vld [vmem:[%s220 + $0x48] sm:$0xff]
      %v238 = vld [vmem:[%s220 + $0x50] sm:$0xff]
      %v239 = vld [vmem:[%s220 + $0x58] sm:$0xff]
      %v240 = vld [vmem:[%s220 + $0x60] sm:$0xff]
      %v241 = vld [vmem:[%s220 + $0x68] sm:$0xff]
      %v242 = vld [vmem:[%s220 + $0x70] sm:$0xff]
      %v243 = vld [vmem:[%s220 + $0x78] sm:$0xff]
      %v244 = vld [vmem:[%s1] sm:$0xff]
      %v245 = vld [vmem:[%s1 + $0x8] sm:$0xff]
      %v246 = vld [vmem:[%s1 + $0x10] sm:$0xff]
      %v247 = vld [vmem:[%s1 + $0x18] sm:$0xff]
      %v248 = vld [vmem:[%s1 + $0x20] sm:$0xff]
      %v249 = vld [vmem:[%s1 + $0x28] sm:$0xff]
      %v250 = vld [vmem:[%s1 + $0x30] sm:$0xff]
      %v251 = vld [vmem:[%s1 + $0x38] sm:$0xff]
      %v252 = vld [vmem:[%s1 + $0x40] sm:$0xff]
      %v253 = vld [vmem:[%s1 + $0x48] sm:$0xff]
      %v254 = vld [vmem:[%s1 + $0x50] sm:$0xff]
      %v255 = vld [vmem:[%s1 + $0x58] sm:$0xff]
      %v256 = vld [vmem:[%s1 + $0x60] sm:$0xff]
      %v257 = vld [vmem:[%s1 + $0x68] sm:$0xff]
      %v258 = vld [vmem:[%s1 + $0x70] sm:$0xff]
      %v259 = vld [vmem:[%s1 + $0x78] sm:$0xff]
      %v260 = vld [vmem:[%s2] sm:$0x1]
      %v262 = vperm.slane %v260, 0
      %264 = vmatpush.msra.mxu0 %v259
      %265 = vmatpush.msra.mxu0 %v258
      %266 = vmatpush.msra.mxu0 %v257
      %267 = vmatpush.msra.mxu0 %v256
      %268 = vmatpush.msra.mxu0 %v255
      %269 = vmatpush.msra.mxu0 %v254
      %270 = vmatpush.msra.mxu0 %v253
      %271 = vmatpush.msra.mxu0 %v252
      %272 = vmatpush.msra.mxu0 %v251
      %273 = vmatpush.msra.mxu0 %v250
      %274 = vmatpush.msra.mxu0 %v249
      %275 = vmatpush.msra.mxu0 %v248
      %276 = vmatpush.msra.mxu0 %v247
      %277 = vmatpush.msra.mxu0 %v246
      %278 = vmatpush.msra.mxu0 %v245
      %279 = vmatpush.msra.mxu0 %v244
      %280 = vmatmul.f32.gmra.mxu0 %v228
      %v281 = vpop.f32.mrf.mxu0
      %v282 = vadd.f32 %v262, %v281
      %283 = vmatmul.f32.gmra.mxu0 %v229
      %v284 = vpop.f32.mrf.mxu0
      %v285 = vadd.f32 %v262, %v284
      %286 = vmatmul.f32.gmra.mxu0 %v230
      %v287 = vpop.f32.mrf.mxu0
      %v288 = vadd.f32 %v262, %v287
      %289 = vmatmul.f32.gmra.mxu0 %v231
      %v290 = vpop.f32.mrf.mxu0
      %v291 = vadd.f32 %v262, %v290
      %292 = vmatmul.f32.gmra.mxu0 %v232
      %v293 = vpop.f32.mrf.mxu0
      %v294 = vadd.f32 %v262, %v293
      %295 = vmatmul.f32.gmra.mxu0 %v233
      %v296 = vpop.f32.mrf.mxu0
      %v297 = vadd.f32 %v262, %v296
      %298 = vmatmul.f32.gmra.mxu0 %v234
      %v299 = vpop.f32.mrf.mxu0
      %v300 = vadd.f32 %v262, %v299
      %301 = vmatmul.f32.gmra.mxu0 %v235
      %v302 = vpop.f32.mrf.mxu0
      %v303 = vadd.f32 %v262, %v302
      %304 = vmatmul.f32.gmra.mxu0 %v236
      %v305 = vpop.f32.mrf.mxu0
      %v306 = vadd.f32 %v262, %v305
      %307 = vmatmul.f32.gmra.mxu0 %v237
      %v308 = vpop.f32.mrf.mxu0
      %v309 = vadd.f32 %v262, %v308
      %310 = vmatmul.f32.gmra.mxu0 %v238
      %v311 = vpop.f32.mrf.mxu0
      %v312 = vadd.f32 %v262, %v311
      %313 = vmatmul.f32.gmra.mxu0 %v239
      %v314 = vpop.f32.mrf.mxu0
      %v315 = vadd.f32 %v262, %v314
      %316 = vmatmul.f32.gmra.mxu0 %v240
      %v317 = vpop.f32.mrf.mxu0
      %v318 = vadd.f32 %v262, %v317
      %319 = vmatmul.f32.gmra.mxu0 %v241
      %v320 = vpop.f32.mrf.mxu0
      %v321 = vadd.f32 %v262, %v320
      %322 = vmatmul.f32.gmra.mxu0 %v242
      %v323 = vpop.f32.mrf.mxu0
      %v324 = vadd.f32 %v262, %v323
      %325 = vmatmul.f32.gmra.mxu0 %v243
      %v326 = vpop.f32.mrf.mxu0
      %v327 = vadd.f32 %v262, %v326
      %328 = vdwg.mxu0
      %v329 = vmax.f32 %v282, 0.0
      %v330 = vmax.f32 %v285, 0.0
      %v331 = vmax.f32 %v288, 0.0
      %v332 = vmax.f32 %v291, 0.0
      %v333 = vmax.f32 %v294, 0.0
      %v334 = vmax.f32 %v297, 0.0
      %v335 = vmax.f32 %v300, 0.0
      %v336 = vmax.f32 %v303, 0.0
      %v337 = vmax.f32 %v306, 0.0
      %v338 = vmax.f32 %v309, 0.0
      %v339 = vmax.f32 %v312, 0.0
      %v340 = vmax.f32 %v315, 0.0
      %v341 = vmax.f32 %v318, 0.0
      %v342 = vmax.f32 %v321, 0.0
      %v343 = vmax.f32 %v324, 0.0
      %v344 = vmax.f32 %v327, 0.0
      %v345 = vld [vmem:[%s3] sm:$0xff]
      %v346 = vld [vmem:[%s3 + $0x8] sm:$0xff]
      %v347 = vld [vmem:[%s3 + $0x10] sm:$0xff]
      %v348 = vld [vmem:[%s3 + $0x18] sm:$0xff]
      %v349 = vld [vmem:[%s3 + $0x20] sm:$0xff]
      %v350 = vld [vmem:[%s3 + $0x28] sm:$0xff]
      %v351 = vld [vmem:[%s3 + $0x30] sm:$0xff]
      %v352 = vld [vmem:[%s3 + $0x38] sm:$0xff]
      %v353 = vld [vmem:[%s3 + $0x40] sm:$0xff]
      %v354 = vld [vmem:[%s3 + $0x48] sm:$0xff]
      %v355 = vld [vmem:[%s3 + $0x50] sm:$0xff]
      %v356 = vld [vmem:[%s3 + $0x58] sm:$0xff]
      %v357 = vld [vmem:[%s3 + $0x60] sm:$0xff]
      %v358 = vld [vmem:[%s3 + $0x68] sm:$0xff]
      %v359 = vld [vmem:[%s3 + $0x70] sm:$0xff]
      %v360 = vld [vmem:[%s3 + $0x78] sm:$0xff]
      %v361 = vld [vmem:[%s4] sm:$0x1]
      %v363 = vperm.slane %v361, 0
      %365 = vmatpush.msra.mxu0 %v360
      %366 = vmatpush.msra.mxu0 %v359
      %367 = vmatpush.msra.mxu0 %v358
      %368 = vmatpush.msra.mxu0 %v357
      %369 = vmatpush.msra.mxu0 %v356
      %370 = vmatpush.msra.mxu0 %v355
      %371 = vmatpush.msra.mxu0 %v354
      %372 = vmatpush.msra.mxu0 %v353
      %373 = vmatpush.msra.mxu0 %v352
      %374 = vmatpush.msra.mxu0 %v351
      %375 = vmatpush.msra.mxu0 %v350
      %376 = vmatpush.msra.mxu0 %v349
      %377 = vmatpush.msra.mxu0 %v348
      %378 = vmatpush.msra.mxu0 %v347
      %379 = vmatpush.msra.mxu0 %v346
      %380 = vmatpush.msra.mxu0 %v345
      %381 = vmatmul.f32.gmra.mxu0 %v329
      %v382 = vpop.f32.mrf.mxu0
      %v383 = vadd.f32 %v363, %v382
      %384 = vmatmul.f32.gmra.mxu0 %v330
      %v385 = vpop.f32.mrf.mxu0
      %v386 = vadd.f32 %v363, %v385
      %387 = vmatmul.f32.gmra.mxu0 %v331
      %v388 = vpop.f32.mrf.mxu0
      %v389 = vadd.f32 %v363, %v388
      %390 = vmatmul.f32.gmra.mxu0 %v332
      %v391 = vpop.f32.mrf.mxu0
      %v392 = vadd.f32 %v363, %v391
      %393 = vmatmul.f32.gmra.mxu0 %v333
      %v394 = vpop.f32.mrf.mxu0
      %v395 = vadd.f32 %v363, %v394
      %396 = vmatmul.f32.gmra.mxu0 %v334
      %v397 = vpop.f32.mrf.mxu0
      %v398 = vadd.f32 %v363, %v397
      %399 = vmatmul.f32.gmra.mxu0 %v335
      %v400 = vpop.f32.mrf.mxu0
      %v401 = vadd.f32 %v363, %v400
      %402 = vmatmul.f32.gmra.mxu0 %v336
      %v403 = vpop.f32.mrf.mxu0
      %v404 = vadd.f32 %v363, %v403
      %405 = vmatmul.f32.gmra.mxu0 %v337
      %v406 = vpop.f32.mrf.mxu0
      %v407 = vadd.f32 %v363, %v406
      %408 = vmatmul.f32.gmra.mxu0 %v338
      %v409 = vpop.f32.mrf.mxu0
      %v410 = vadd.f32 %v363, %v409
      %411 = vmatmul.f32.gmra.mxu0 %v339
      %v412 = vpop.f32.mrf.mxu0
      %v413 = vadd.f32 %v363, %v412
      %414 = vmatmul.f32.gmra.mxu0 %v340
      %v415 = vpop.f32.mrf.mxu0
      %v416 = vadd.f32 %v363, %v415
      %417 = vmatmul.f32.gmra.mxu0 %v341
      %v418 = vpop.f32.mrf.mxu0
      %v419 = vadd.f32 %v363, %v418
      %420 = vmatmul.f32.gmra.mxu0 %v342
      %v421 = vpop.f32.mrf.mxu0
      %v422 = vadd.f32 %v363, %v421
      %423 = vmatmul.f32.gmra.mxu0 %v343
      %v424 = vpop.f32.mrf.mxu0
      %v425 = vadd.f32 %v363, %v424
      %426 = vmatmul.f32.gmra.mxu0 %v344
      %v427 = vpop.f32.mrf.mxu0
      %v428 = vadd.f32 %v363, %v427
      %429 = vdwg.mxu0
      %430 = vst [vmem:[%s226] sm:$0xff] %v383
      %431 = vst [vmem:[%s226 + $0x8] sm:$0xff] %v386
      %432 = vst [vmem:[%s226 + $0x10] sm:$0xff] %v389
      %433 = vst [vmem:[%s226 + $0x18] sm:$0xff] %v392
      %434 = vst [vmem:[%s226 + $0x20] sm:$0xff] %v395
      %435 = vst [vmem:[%s226 + $0x28] sm:$0xff] %v398
      %436 = vst [vmem:[%s226 + $0x30] sm:$0xff] %v401
      %437 = vst [vmem:[%s226 + $0x38] sm:$0xff] %v404
      %438 = vst [vmem:[%s226 + $0x40] sm:$0xff] %v407
      %439 = vst [vmem:[%s226 + $0x48] sm:$0xff] %v410
      %440 = vst [vmem:[%s226 + $0x50] sm:$0xff] %v413
      %441 = vst [vmem:[%s226 + $0x58] sm:$0xff] %v416
      %442 = vst [vmem:[%s226 + $0x60] sm:$0xff] %v419
      %443 = vst [vmem:[%s226 + $0x68] sm:$0xff] %v422
      %444 = vst [vmem:[%s226 + $0x70] sm:$0xff] %v425
      %445 = vst [vmem:[%s226 + $0x78] sm:$0xff] %v428
      %s446 = smul.u32 16, %s16
      %p447 = scmp.lt.s32.totalorder %s446, 31
      %s448 = scalar_select %p447, %s446, 31
      %s449 = smul.addr %s448, 8
      %s450 = scalar_lea.vmem %s5, %s449
      // Predicated region
      $region41: #{mlp_forward.1} parent=39 // pred_check
        %p451 = pneg %p144
      $region42: #{mlp_forward.1} parent=39 // pred_check_branch
        %453 = sbr.rel (%p451) target = $region44
      $region43: #{mlp_forward.1} parent=39 // pred_region
        %s454 = smul.u32 16, %s16
      $region44: #{mlp_forward.1} parent=39 // pred_fallthru
        _
    $region40: #{mlp_forward.1} parent=5 // pred_fallthru
      _
    %p455 = scmp.le.s32.totalorder 2, %s11
    // Predicated region
    $region45: #{mlp_forward.1} parent=5 // pred_check
      %p456 = pneg %p455
    $region46: #{mlp_forward.1} parent=5 // pred_check_branch
      %458 = sbr.rel (%p456) target = $region48
    $region47: #{mlp_forward.1} parent=5 // pred_region
      %s459 = ssub.s32 %s11, 2
      // Predicated region
      $region49: #{mlp_forward.1} parent=47 // pred_check
        %p460 = pneg %p150
      $region50: #{mlp_forward.1} parent=47 // pred_check_branch
        %462 = sbr.rel (%p460) target = $region52
      $region51: #{mlp_forward.1} parent=47 // pred_region
        %s463 = smul.u32 16, %s17
        %p464 = scmp.lt.s32.totalorder %s463, 31
        %s465 = scalar_select %p464, %s463, 31
        %s466 = smul.addr %s465, 8
        %s467 = scalar_lea.vmem %s5, %s466
      $region52: #{mlp_forward.1} parent=47 // pred_fallthru
        _
    $region48: #{mlp_forward.1} parent=5 // pred_fallthru
      _
  $region6: #{mlp_forward.1} parent=0 // loop_footer
    %s15 = sadd.s32 1, %s11
  $region7: #{mlp_forward.1} parent=0 // loop_footer_branch
    %10 = sbr.rel target = $region3
  $region8: #{mlp_forward.1} parent=0 // loop_exit
    _

</llo_original>
